<compile_context>
chip_gen: v7x
topology: tpu7x:2x2x1
jax: 0.10.0
libtpu: 0.0.40
codegen_flags: <defaults>
</compile_context>

<pallas_src>
import math
import functools

import jax
import jax.numpy as jnp
from jax.experimental import pallas as pl
from jax.experimental.pallas import tpu as pltpu


def _round_up(v, m):
    return (v + m - 1) // m * m


def _moe_linear_kernel(coef_ref, x_ref, w_ref, b_ref, o_ref):
    # Grid: (N tiles, C_out tiles, experts). Expert axis (2) is the reduction.
    k = pl.program_id(2)

    coef = coef_ref[...]                                 # (bn, E), resident, lane-dense

    @pl.when(k == 0)
    def _():
        # Initialize the output tile with the mixed bias: (bn, E) @ (E, bco).
        o_ref[...] = jnp.dot(coef, b_ref[...], preferred_element_type=jnp.float32)

    # Select this expert's per-sample coefficient from the resident (bn, E) block
    # (lane mask + reduce; avoids a lane-sparse (bn, 1) DMA every grid step).
    e_ids = jax.lax.broadcasted_iota(jnp.int32, coef.shape, 1)
    c_e = jnp.sum(jnp.where(e_ids == k, coef, jnp.zeros_like(coef)),
                  axis=1, keepdims=True)                 # (bn, 1)

    # Fold the coefficient into x, then contract against W_e in its native
    # (C_out, C_in) layout: (bn, C_in) x (bco, C_in) -> (bn, bco) on the MXU.
    xc = c_e.astype(x_ref.dtype) * x_ref[...]
    o_ref[...] += jax.lax.dot_general(
        xc, w_ref[...],
        dimension_numbers=(((1,), (1,)), ((), ())),
        preferred_element_type=jnp.float32)


@functools.partial(jax.jit,
                   static_argnames=("block_n", "block_co", "vmem_limit_bytes"))
def multiple_experts_linear(x, coefficients, weight, bias, *,
                            block_n=None, block_co=None, vmem_limit_bytes=None):
    """x: (N, C_in), coefficients: (N, E), weight: (E, C_out, C_in), bias: (E, C_out)."""
    n, c_in = x.shape
    e, c_out, _ = weight.shape

    # Tile sizes (re-derive per generation: shrink block_co on v7x's 64 MiB VMEM,
    # grow it / raise vmem_limit_bytes on v5e/v6e's 128 MiB).
    if block_co is None:
        block_co = min(512, _round_up(c_out, 128))
    block_co = _round_up(block_co, 128)
    if block_n is None:
        block_n = min(256, _round_up(n, 8))
    block_n = _round_up(block_n, 8)

    # Lane-dense padding (ideally done once at param-init time, not per call).
    c_out_p = _round_up(c_out, block_co)
    n_p = _round_up(n, block_n)
    if c_out_p != c_out:
        weight = jnp.pad(weight, ((0, 0), (0, c_out_p - c_out), (0, 0)))
        bias = jnp.pad(bias, ((0, 0), (0, c_out_p - c_out)))
    if n_p != n:
        x = jnp.pad(x, ((0, n_p - n), (0, 0)))
        coefficients = jnp.pad(coefficients, ((0, n_p - n), (0, 0)))

    grid = (n_p // block_n, c_out_p // block_co, e)

    out_padded = pl.pallas_call(
        _moe_linear_kernel,
        out_shape=jax.ShapeDtypeStruct((n_p, c_out_p), jnp.float32),
        grid_spec=pltpu.PrefetchScalarGridSpec(
            num_scalar_prefetch=0,
            grid=grid,
            in_specs=[
                # coefficients: (bn, E) resident, lane-dense
                pl.BlockSpec((block_n, e), lambda i, j, k: (i, 0)),
                # x: (bn, C_in) resident across C_out tiles / experts
                pl.BlockSpec((block_n, c_in), lambda i, j, k: (i, 0)),
                # weight: native (E, C_out, C_in) layout, expert dim squeezed
                pl.BlockSpec((pl.Squeezed(), block_co, c_in),
                             lambda i, j, k: (k, j, 0)),
                # bias: one resident (E, bco) block (used only at k == 0)
                pl.BlockSpec((e, block_co), lambda i, j, k: (0, j)),
            ],
            out_specs=pl.BlockSpec((block_n, block_co), lambda i, j, k: (i, j)),
        ),
        compiler_params=pltpu.CompilerParams(
            dimension_semantics=("parallel", "parallel", "arbitrary"),
            vmem_limit_bytes=vmem_limit_bytes),
    )(coefficients, x, weight, bias)

    return out_padded[:n, :c_out]


def init_params(key, in_channels, out_channels, num_experts):
    """kaiming_uniform(a=sqrt(5)) equivalent: bound = 1/sqrt(fan_in)."""
    kw, kb = jax.random.split(key)
    bound = 1.0 / math.sqrt(in_channels)
    weight = jax.random.uniform(
        kw, (num_experts, out_channels, in_channels),
        minval=-bound, maxval=bound, dtype=jnp.float32)
    bias = jax.random.uniform(
        kb, (num_experts, out_channels),
        minval=-bound, maxval=bound, dtype=jnp.float32)
    return weight, bias


def reference(x, coefficients, weight, bias):
    # mirror the torch einsum / baddbmm path in plain JAX
    mixed_w = jnp.einsum('bc,cmn->bmn', coefficients, weight)       # (N, out, in)
    mixed_b = coefficients @ bias                                   # (N, out)
    return jnp.einsum('bmn,bn->bm', mixed_w, x) + mixed_b


if __name__ == "__main__":
    N, C_IN, C_OUT, E = 8, 32, 64, 4

    key = jax.random.PRNGKey(0)
    k_x, k_c, k_p = jax.random.split(key, 3)

    x = jax.random.normal(k_x, (N, C_IN), dtype=jnp.float32)
    coefficients = jax.nn.softmax(
        jax.random.normal(k_c, (N, E), dtype=jnp.float32), axis=-1)
    weight, bias = init_params(k_p, C_IN, C_OUT, E)

    out = multiple_experts_linear(x, coefficients, weight, bias)
    out = jax.block_until_ready(out)

    ref = reference(x, coefficients, weight, bias)
    assert out.shape == (N, C_OUT)
    assert jnp.allclose(out, ref, atol=1e-4, rtol=1e-4), "mismatch vs reference"

    print("KERNEL_OK")
</pallas_src>

<mosaic_0001>
module attributes {stable_mosaic.version = 11 : i64} {
  func.func @_moe_linear_kernel(%arg0: i32, %arg1: i32, %arg2: i32, %arg3: memref<8x4xf32, #tpu.memory_space<vmem>>, %arg4: memref<8x32xf32, #tpu.memory_space<vmem>>, %arg5: memref<1x128x32xf32, #tpu.memory_space<vmem>>, %arg6: memref<4x128xf32, #tpu.memory_space<vmem>>, %arg7: memref<8x128xf32, #tpu.memory_space<vmem>>) attributes {dimension_semantics = [#tpu.dimension_semantics<parallel>, #tpu.dimension_semantics<parallel>, #tpu.dimension_semantics<arbitrary>], iteration_bounds = array<i64: 1, 1, 4>, scalar_prefetch = 0 : i64, scratch_operands = 0 : i64, tpu.core_type = #tpu.core_type<tc>, window_params = [{transform_indices = @transform_0, window_bounds = array<i64: 8, 4>}, {transform_indices = @transform_1, window_bounds = array<i64: 8, 32>}, {transform_indices = @transform_2, window_bounds = array<i64: 1, 128, 32>}, {transform_indices = @transform_3, window_bounds = array<i64: 4, 128>}, {transform_indices = @transform_4, window_bounds = array<i64: 8, 128>}]} {
    %c0 = arith.constant 0 : index
    %c0_0 = arith.constant 0 : index
    %0 = vector.load %arg3[%c0, %c0_0] : memref<8x4xf32, #tpu.memory_space<vmem>>, vector<8x4xf32>
    %c0_i32 = arith.constant 0 : i32
    %1 = arith.cmpi eq, %arg2, %c0_i32 : i32
    %2 = arith.extui %1 : i1 to i32
    %c0_i32_1 = arith.constant 0 : i32
    %3 = arith.cmpi ne, %2, %c0_i32_1 : i32
    scf.if %3 {
      %c0_13 = arith.constant 0 : index
      %c0_14 = arith.constant 0 : index
      %20 = vector.load %arg6[%c0_13, %c0_14] : memref<4x128xf32, #tpu.memory_space<vmem>>, vector<4x128xf32>
      %cst_15 = arith.constant dense<0.000000e+00> : vector<8x128xf32>
      %21 = tpu.matmul %0, %20, %cst_15 {dimension_numbers = #tpu.dot_dimension_numbers<[1], [0], [0], [1], [0, 0, 1, 1], [], []>} : vector<8x4xf32>, vector<4x128xf32>, vector<8x128xf32> -> vector<8x128xf32>
      %c0_16 = arith.constant 0 : index
      %c0_17 = arith.constant 0 : index
      %22 = vector.load %arg7[%c0_16, %c0_17] : memref<8x128xf32, #tpu.memory_space<vmem>>, vector<8x128xf32>
      tpu.vector_store %arg7[%c0_16, %c0_17], %21 {strides = array<i32>} : memref<8x128xf32, #tpu.memory_space<vmem>>, vector<8x128xf32>,
    } else {
    }
    %4 = tpu.iota {dimensions = array<i32: 1>} : vector<8x4xi32>
    %5 = vector.broadcast %arg2 : i32 to vector<8x4xi32>
    %6 = arith.cmpi eq, %4, %5 : vector<8x4xi32>
    %cst = arith.constant 0.000000e+00 : f32
    %7 = vector.broadcast %cst : f32 to vector<8x4xf32>
    %8 = arith.select %6, %0, %7 : vector<8x4xi1>, vector<8x4xf32>
    %cst_2 = arith.constant dense<0.000000e+00> : vector<8xf32>
    %9 = vector.multi_reduction <add>, %8, %cst_2 [1] : vector<8x4xf32> to vector<8xf32>
    %10 = vector.shape_cast %9 : vector<8xf32> to vector<8x1xf32>
    %c0_3 = arith.constant 0 : index
    %c0_4 = arith.constant 0 : index
    %11 = vector.load %arg4[%c0_3, %c0_4] : memref<8x32xf32, #tpu.memory_space<vmem>>, vector<8x32xf32>
    %12 = vector.broadcast %10 : vector<8x1xf32> to vector<8x32xf32>
    %13 = arith.mulf %12, %11 : vector<8x32xf32>
    %c0_5 = arith.constant 0 : index
    %c0_6 = arith.constant 0 : index
    %14 = vector.load %arg7[%c0_5, %c0_6] : memref<8x128xf32, #tpu.memory_space<vmem>>, vector<8x128xf32>
    %c0_7 = arith.constant 0 : index
    %c0_8 = arith.constant 0 : index
    %c0_9 = arith.constant 0 : index
    %15 = vector.load %arg5[%c0_7, %c0_8, %c0_9] : memref<1x128x32xf32, #tpu.memory_space<vmem>>, vector<1x128x32xf32>
    %16 = vector.shape_cast %15 : vector<1x128x32xf32> to vector<128x32xf32>
    %cst_10 = arith.constant dense<0.000000e+00> : vector<8x128xf32>
    %17 = tpu.matmul %13, %16, %cst_10 {dimension_numbers = #tpu.dot_dimension_numbers<[1], [1], [0], [0], [0, 0, 1, 0], [], []>} : vector<8x32xf32>, vector<128x32xf32>, vector<8x128xf32> -> vector<8x128xf32>
    %18 = arith.addf %14, %17 : vector<8x128xf32>
    %c0_11 = arith.constant 0 : index
    %c0_12 = arith.constant 0 : index
    %19 = vector.load %arg7[%c0_11, %c0_12] : memref<8x128xf32, #tpu.memory_space<vmem>>, vector<8x128xf32>
    tpu.vector_store %arg7[%c0_11, %c0_12], %18 {strides = array<i32>} : memref<8x128xf32, #tpu.memory_space<vmem>>, vector<8x128xf32>,
    return
  }
  func.func @transform_0(%arg0: i32, %arg1: i32, %arg2: i32) -> (i32, i32) {
    %c0_i32 = arith.constant 0 : i32
    %c0_i32_0 = arith.constant 0 : i32
    return %arg0, %c0_i32 : i32, i32
  }
  func.func @transform_1(%arg0: i32, %arg1: i32, %arg2: i32) -> (i32, i32) {
    %c0_i32 = arith.constant 0 : i32
    %c0_i32_0 = arith.constant 0 : i32
    return %arg0, %c0_i32 : i32, i32
  }
  func.func @transform_2(%arg0: i32, %arg1: i32, %arg2: i32) -> (i32, i32, i32) {
    %c0_i32 = arith.constant 0 : i32
    %c0_i32_0 = arith.constant 0 : i32
    return %arg2, %arg1, %c0_i32 : i32, i32, i32
  }
  func.func @transform_3(%arg0: i32, %arg1: i32, %arg2: i32) -> (i32, i32) {
    %c0_i32 = arith.constant 0 : i32
    %c0_i32_0 = arith.constant 0 : i32
    return %c0_i32, %arg1 : i32, i32
  }
  func.func @transform_4(%arg0: i32, %arg1: i32, %arg2: i32) -> (i32, i32) {
    %c0_i32 = arith.constant 0 : i32
    return %arg0, %arg1 : i32, i32
  }
}

</mosaic_0001>

<llo_original>
// kernel: multiple_experts_linear.1
$region0: #{multiple_experts_linear.1}
  #allocation0 [shape = 'u32[]', space=smem, size = 0x4, offset = 0x4, fixed_abs, tag = 'smem constant byte address 0x4 - core index']
  #allocation1 [shape = 'u32[144,128]{1,0:T(1,128)}', space=vmem, size = 0x12000, scoped, tag = 'internal scratch']
  %s0 = inlined_call_operand.vmem [shape: f32[8,4], index: 0, kind: input, shape index: {}]
  %s1 = inlined_call_operand.vmem [shape: f32[8,32], index: 1, kind: input, shape index: {}]
  %s2 = inlined_call_operand.vmem [shape: f32[4,128,32], index: 2, kind: input, shape index: {}]
  %s3 = inlined_call_operand.vmem [shape: f32[4,128], index: 3, kind: input, shape index: {}]
  %s4 = inlined_call_operand.hbm [shape: f32[8,128], index: 4, kind: output, shape index: {}]
  %s5 = sld [smem:[#allocation0]]
  $region53: #{multiple_experts_linear.1} parent=0
    _
  %s7 = ssub.s32 1, %s5
  %s8 = scalar_select 0, %s7, %s5
  $region1: #{multiple_experts_linear.1} parent=0
    #allocation2 [shape = 'u8[4096]{0}', space=vmem, size = 0x1000, scoped, tag = 'output window, operand 0, single buffered']
    #allocation3 [shape = 's32[2]{0}', space=sflag, size = 0x8, scoped, tag = 'scoped memory for multiple_experts_linear.1']
    %9 = vsyncpa [#allocation3], 0
    loop: start=0, step=1, limit=6
    $region2: #{multiple_experts_linear.1} parent=1 // loop_pre_header
      _
    $region3: #{multiple_experts_linear.1} parent=1 // loop_header
      %s11 = sphi 0, %s15
      %p12 = scmp.ge.s32.totalorder %s11, 6
      %s18 = sphi 0, %s37
      %s19 = sphi 0, %s33
      %s20 = sphi 0, %s29
      %s21 = sphi 0, %s18
      %s22 = sphi 0, %s19
      %s23 = sphi 0, %s20
      %s24 = sphi 0, %s21
      %s25 = sphi 0, %s22
      %s26 = sphi 0, %s23
      %s40 = sphi 0, %s42
      %s43 = sphi 0, %s40
      %s44 = sphi 0, %s43
      %s60 = sphi 0, %s44
      %s66 = sphi 0, %s68
      %s69 = sphi 0, %s66
      %s70 = sphi 0, %s69
      %s86 = sphi 0, %s70
      %s94 = sphi 0, %s96
      %s97 = sphi 0, %s94
      %s98 = sphi 0, %s97
      %s114 = sphi 0, %s98
      %s120 = sphi 0, %s122
      %s123 = sphi 0, %s120
      %s124 = sphi 0, %s123
      %s140 = sphi 0, %s124
      %s148 = sphi 0, %s150
      %s151 = sphi 0, %s148
      %s152 = sphi 0, %s151
      %s168 = sphi 0, %s152
    $region4: #{multiple_experts_linear.1} parent=1 // loop_header_branch
      %14 = sbr.rel (%p12) target = $region8
    $region5: #{multiple_experts_linear.1} parent=1 // loop_body
      %s16 = ssub.s32 %s11, 1
      %s17 = ssub.s32 %s11, 2
      %s27 = sadd.s32 1, %s20
      %p28 = scmp.ge.s32.totalorder %s27, 4
      %s29 = scalar_select %p28, 0, %s27
      %s30 = sadd.s32 1, %s19
      %s31 = scalar_select %p28, %s30, %s19
      %p32 = scmp.ge.s32.totalorder %s31, 1
      %s33 = scalar_select %p32, 0, %s31
      %s34 = sadd.s32 1, %s18
      %s35 = scalar_select %p32, %s34, %s18
      %p36 = scmp.ge.s32.totalorder %s35, 1
      %s37 = scalar_select %p36, 0, %s35
      %s38 = ssub.s32 %s18, %s37
      %p39 = scmp.eq.s32.totalorder %s38, 0
      %s41 = sadd.s32 %s40, 1
      %s42 = scalar_select %p39, %s40, %s41
      %p45 = pneg %p39
      %p46 = scmp.eq.s32.totalorder %s11, 3
      %p47 = por %p45, %p46
      %p48 = scmp.ne.s32.totalorder %s40, %s43
      %p49 = scmp.eq.s32.totalorder %s11, 0
      %p50 = por %p48, %p49
      %p51 = scmp.ne.s32.totalorder %s40, %s43
      %p52 = scmp.eq.s32.totalorder %s16, 3
      %p53 = por %p51, %p52
      %p54 = scmp.ne.s32.totalorder %s43, %s44
      %p55 = scmp.eq.s32.totalorder %s16, 0
      %p56 = por %p54, %p55
      %p57 = scmp.ne.s32.totalorder %s43, %s44
      %p58 = scmp.eq.s32.totalorder %s17, 3
      %p59 = por %p57, %p58
      %p61 = scmp.ne.s32.totalorder %s44, %s60
      %p62 = scmp.eq.s32.totalorder %s17, 0
      %p63 = por %p61, %p62
      %s64 = ssub.s32 %s18, %s37
      %p65 = scmp.eq.s32.totalorder %s64, 0
      %s67 = sadd.s32 %s66, 1
      %s68 = scalar_select %p65, %s66, %s67
      %p71 = pneg %p65
      %p72 = scmp.eq.s32.totalorder %s11, 3
      %p73 = por %p71, %p72
      %p74 = scmp.ne.s32.totalorder %s66, %s69
      %p75 = scmp.eq.s32.totalorder %s11, 0
      %p76 = por %p74, %p75
      %p77 = scmp.ne.s32.totalorder %s66, %s69
      %p78 = scmp.eq.s32.totalorder %s16, 3
      %p79 = por %p77, %p78
      %p80 = scmp.ne.s32.totalorder %s69, %s70
      %p81 = scmp.eq.s32.totalorder %s16, 0
      %p82 = por %p80, %p81
      %p83 = scmp.ne.s32.totalorder %s69, %s70
      %p84 = scmp.eq.s32.totalorder %s17, 3
      %p85 = por %p83, %p84
      %p87 = scmp.ne.s32.totalorder %s70, %s86
      %p88 = scmp.eq.s32.totalorder %s17, 0
      %p89 = por %p87, %p88
      %s90 = ssub.s32 %s20, %s29
      %s91 = ssub.s32 %s19, %s33
      %s92 = sor.u32 %s90, %s91
      %p93 = scmp.eq.s32.totalorder %s92, 0
      %s95 = sadd.s32 %s94, 1
      %s96 = scalar_select %p93, %s94, %s95
      %p99 = pneg %p93
      %p100 = scmp.eq.s32.totalorder %s11, 3
      %p101 = por %p99, %p100
      %p102 = scmp.ne.s32.totalorder %s94, %s97
      %p103 = scmp.eq.s32.totalorder %s11, 0
      %p104 = por %p102, %p103
      %p105 = scmp.ne.s32.totalorder %s94, %s97
      %p106 = scmp.eq.s32.totalorder %s16, 3
      %p107 = por %p105, %p106
      %p108 = scmp.ne.s32.totalorder %s97, %s98
      %p109 = scmp.eq.s32.totalorder %s16, 0
      %p110 = por %p108, %p109
      %p111 = scmp.ne.s32.totalorder %s97, %s98
      %p112 = scmp.eq.s32.totalorder %s17, 3
      %p113 = por %p111, %p112
      %p115 = scmp.ne.s32.totalorder %s98, %s114
      %p116 = scmp.eq.s32.totalorder %s17, 0
      %p117 = por %p115, %p116
      %s118 = ssub.s32 %s19, %s33
      %p119 = scmp.eq.s32.totalorder %s118, 0
      %s121 = sadd.s32 %s120, 1
      %s122 = scalar_select %p119, %s120, %s121
      %p125 = pneg %p119
      %p126 = scmp.eq.s32.totalorder %s11, 3
      %p127 = por %p125, %p126
      %p128 = scmp.ne.s32.totalorder %s120, %s123
      %p129 = scmp.eq.s32.totalorder %s11, 0
      %p130 = por %p128, %p129
      %p131 = scmp.ne.s32.totalorder %s120, %s123
      %p132 = scmp.eq.s32.totalorder %s16, 3
      %p133 = por %p131, %p132
      %p134 = scmp.ne.s32.totalorder %s123, %s124
      %p135 = scmp.eq.s32.totalorder %s16, 0
      %p136 = por %p134, %p135
      %p137 = scmp.ne.s32.totalorder %s123, %s124
      %p138 = scmp.eq.s32.totalorder %s17, 3
      %p139 = por %p137, %p138
      %p141 = scmp.ne.s32.totalorder %s124, %s140
      %p142 = scmp.eq.s32.totalorder %s17, 0
      %p143 = por %p141, %p142
      %s144 = ssub.s32 %s18, %s37
      %s145 = ssub.s32 %s19, %s33
      %s146 = sor.u32 %s144, %s145
      %p147 = scmp.eq.s32.totalorder %s146, 0
      %s149 = sadd.s32 %s148, 1
      %s150 = scalar_select %p147, %s148, %s149
      %p153 = pneg %p147
      %p154 = scmp.eq.s32.totalorder %s11, 3
      %p155 = por %p153, %p154
      %p156 = scmp.ne.s32.totalorder %s148, %s151
      %p157 = scmp.eq.s32.totalorder %s11, 0
      %p158 = por %p156, %p157
      %p159 = scmp.ne.s32.totalorder %s148, %s151
      %p160 = scmp.eq.s32.totalorder %s16, 3
      %p161 = por %p159, %p160
      %p162 = scmp.ne.s32.totalorder %s151, %s152
      %p163 = scmp.eq.s32.totalorder %s16, 0
      %p164 = por %p162, %p163
      %p165 = scmp.ne.s32.totalorder %s151, %s152
      %p166 = scmp.eq.s32.totalorder %s17, 3
      %p167 = por %p165, %p166
      %p169 = scmp.ne.s32.totalorder %s152, %s168
      %p170 = scmp.eq.s32.totalorder %s17, 0
      %p171 = por %p169, %p170
      %p172 = scmp.le.s32.totalorder 1, %s11
      %p173 = scmp.lt.s32.totalorder %s11, 5
      %p174 = pnand %p172, %p173
      %p175 = pneg %p174
      // Predicated region
      $region9: #{multiple_experts_linear.1} parent=5 // pred_check
        _
      $region10: #{multiple_experts_linear.1} parent=5 // pred_check_branch
        %177 = sbr.rel (%p174) target = $region12
      $region11: #{multiple_experts_linear.1} parent=5 // pred_region
        %s178 = ssub.s32 %s11, 1
        // Predicated region
        $region13: #{multiple_experts_linear.1} parent=11 // pred_check
          %p179 = pneg %p56
        $region14: #{multiple_experts_linear.1} parent=11 // pred_check_branch
          %181 = sbr.rel (%p179) target = $region16
        $region15: #{multiple_experts_linear.1} parent=11 // pred_region
          %p182 = scmp.lt.s32.totalorder %s21, 0
          %s183 = scalar_select %p182, %s21, 0
          %s184 = smul.addr %s183, 8
          %s185 = scalar_lea.vmem %s0, %s184
        $region16: #{multiple_experts_linear.1} parent=11 // pred_fallthru
          _
        // Predicated region
        $region17: #{multiple_experts_linear.1} parent=11 // pred_check
          %p186 = pneg %p82
        $region18: #{multiple_experts_linear.1} parent=11 // pred_check_branch
          %188 = sbr.rel (%p186) target = $region20
        $region19: #{multiple_experts_linear.1} parent=11 // pred_region
          %p189 = scmp.lt.s32.totalorder %s21, 0
          %s190 = scalar_select %p189, %s21, 0
          %s191 = smul.addr %s190, 8
          %s192 = scalar_lea.vmem %s1, %s191
        $region20: #{multiple_experts_linear.1} parent=11 // pred_fallthru
          _
        // Predicated region
        $region21: #{multiple_experts_linear.1} parent=11 // pred_check
          %p193 = pneg %p136
        $region22: #{multiple_experts_linear.1} parent=11 // pred_check_branch
          %195 = sbr.rel (%p193) target = $region24
        $region23: #{multiple_experts_linear.1} parent=11 // pred_region
          %p196 = scmp.lt.s32.totalorder %s22, 0
          %s197 = scalar_select %p196, %s22, 0
          %s198 = smul.addr %s197, 4
          %s199 = scalar_lea.vmem %s3, %s198
        $region24: #{multiple_experts_linear.1} parent=11 // pred_fallthru
          _
      $region12: #{multiple_experts_linear.1} parent=5 // pred_fallthru
        _
      %p200 = scmp.lt.s32.totalorder %s11, 4
      // Predicated region
      $region25: #{multiple_experts_linear.1} parent=5 // pred_check
        %p201 = pneg %p200
      $region26: #{multiple_experts_linear.1} parent=5 // pred_check_branch
        %203 = sbr.rel (%p201) target = $region28
      $region27: #{multiple_experts_linear.1} parent=5 // pred_region
        // Predicated region
        $region29: #{multiple_experts_linear.1} parent=27 // pred_check
          %p204 = pneg %p104
        $region30: #{multiple_experts_linear.1} parent=27 // pred_check_branch
          %206 = sbr.rel (%p204) target = $region32
        $region31: #{multiple_experts_linear.1} parent=27 // pred_region
          %s207 = smul.u32 16, %s19
          %p208 = scmp.lt.s32.totalorder %s20, 3
          %s209 = scalar_select %p208, %s20, 3
          %p210 = scmp.lt.s32.totalorder %s207, 15
          %s211 = scalar_select %p210, %s207, 15
          %s212 = smul.addr %s209, 16
          %s213 = sadd.s32 %s211, %s212
          %s214 = smul.addr %s213, 8
          %s215 = scalar_lea.vmem %s2, %s214
          %s216 = smul.u32 16, %s19
        $region32: #{multiple_experts_linear.1} parent=27 // pred_fallthru
          _
      $region28: #{multiple_experts_linear.1} parent=5 // pred_fallthru
        _
      %p217 = scmp.le.s32.totalorder 1, %s11
      %p218 = scmp.lt.s32.totalorder %s11, 5
      %p219 = pnand %p217, %p218
      %p220 = pneg %p219
      // Predicated region
      $region33: #{multiple_experts_linear.1} parent=5 // pred_check
        _
      $region34: #{multiple_experts_linear.1} parent=5 // pred_check_branch
        %222 = sbr.rel (%p219) target = $region36
      $region35: #{multiple_experts_linear.1} parent=5 // pred_region
        %s223 = ssub.s32 %s11, 1
        %p224 = scmp.lt.s32.totalorder %s21, 0
        %s225 = scalar_select %p224, %s21, 0
        %s226 = smul.addr %s225, 8
        %s227 = scalar_lea.vmem %s0, %s226
        %p228 = pneg %p56
        %p229 = pneg %p53
        %p230 = scmp.lt.s32.totalorder %s21, 0
        %s231 = scalar_select %p230, %s21, 0
        %s232 = smul.addr %s231, 8
        %s233 = scalar_lea.vmem %s1, %s232
        %p234 = pneg %p82
        %p235 = pneg %p79
        %s236 = smul.u32 16, %s22
        %p237 = scmp.lt.s32.totalorder %s23, 3
        %s238 = scalar_select %p237, %s23, 3
        %p239 = scmp.lt.s32.totalorder %s236, 15
        %s240 = scalar_select %p239, %s236, 15
        %s241 = smul.addr %s238, 16
        %s242 = sadd.s32 %s240, %s241
        %s243 = smul.addr %s242, 8
        %s244 = scalar_lea.vmem %s2, %s243
        %p245 = pneg %p110
        %p246 = pneg %p107
        %p247 = scmp.lt.s32.totalorder %s22, 0
        %s248 = scalar_select %p247, %s22, 0
        %s249 = smul.addr %s248, 4
        %s250 = scalar_lea.vmem %s3, %s249
        %p251 = pneg %p136
        %p252 = pneg %p133
        %p253 = pneg %p164
        %p254 = pneg %p161
        %p255 = scmp.lt.s32.totalorder %s21, 0
        %s256 = scalar_select %p255, %s21, 0
        %s257 = smul.addr %s256, 8
        %s258 = scalar_lea.vmem %s0, %s257
        %p259 = scmp.lt.s32.totalorder %s21, 0
        %s260 = scalar_select %p259, %s21, 0
        %s261 = smul.addr %s260, 8
        %s262 = scalar_lea.vmem %s1, %s261
        %s263 = smul.u32 16, %s22
        %p264 = scmp.lt.s32.totalorder %s23, 3
        %s265 = scalar_select %p264, %s23, 3
        %p266 = scmp.lt.s32.totalorder %s263, 15
        %s267 = scalar_select %p266, %s263, 15
        %s268 = smul.addr %s265, 16
        %s269 = sadd.s32 %s267, %s268
        %s270 = smul.addr %s269, 8
        %s271 = scalar_lea.vmem %s2, %s270
        %s272 = smul.u32 16, %s22
        %p273 = scmp.lt.s32.totalorder %s22, 0
        %s274 = scalar_select %p273, %s22, 0
        %s275 = smul.addr %s274, 4
        %s276 = scalar_lea.vmem %s3, %s275
        %v277 = vld [vmem:[%s258] sm:$0xff]
        %p278 = scmp.eq.s32.totalorder %s23, 0
        // Predicated region
        $region37: #{multiple_experts_linear.1} parent=35 // pred_check
          %p279 = pneg %p278
        $region38: #{multiple_experts_linear.1} parent=35 // pred_check_branch
          %281 = sbr.rel (%p279) target = $region40
        $region39: #{multiple_experts_linear.1} parent=35 // pred_region
          %v282 = vld [vmem:[%s276] sm:$0xf]
          %vm283 = vcmask 31744
          %v285 = vsel %vm283, %v277, 0
          %vm287 = vcmask 1043456
          %v289 = vsel %vm287, %v282, 0
          %291 = vmatprep.subr.mxu0 0.0
          %292 = vmatpush1.msra.mxu0 %v289
          %293 = vmatprep.subr.mxu0 0.0
          %294 = vmatpush1.msra.mxu0 0.0
          %295 = vmatprep.subr.mxu0 0.0
          %296 = vmatpush1.msra.mxu0 0.0
          %297 = vmatprep.subr.mxu0 0.0
          %298 = vmatpush1.msra.mxu0 0.0
          %299 = vmatprep.subr.mxu0 0.0
          %300 = vmatpush1.msra.mxu0 0.0
          %301 = vmatprep.subr.mxu0 0.0
          %302 = vmatpush1.msra.mxu0 0.0
          %303 = vmatprep.subr.mxu0 0.0
          %304 = vmatpush1.msra.mxu0 0.0
          %305 = vmatprep.subr.mxu0 0.0
          %306 = vmatpush1.msra.mxu0 0.0
          %307 = vmatprep.subr.mxu0 0.0
          %308 = vmatpush1.msra.mxu0 0.0
          %309 = vmatprep.subr.mxu0 0.0
          %310 = vmatpush1.msra.mxu0 0.0
          %311 = vmatprep.subr.mxu0 0.0
          %312 = vmatpush1.msra.mxu0 0.0
          %313 = vmatprep.subr.mxu0 0.0
          %314 = vmatpush1.msra.mxu0 0.0
          %315 = vmatprep.subr.mxu0 0.0
          %316 = vmatpush1.msra.mxu0 0.0
          %317 = vmatprep.subr.mxu0 0.0
          %318 = vmatpush1.msra.mxu0 0.0
          %319 = vmatprep.subr.mxu0 0.0
          %320 = vmatpush1.msra.mxu0 0.0
          %321 = vmatprep.subr.mxu0 0.0
          %322 = vmatpush1.msra.mxu0 0.0
          %323 = vmatprep.subr.mxu0 0.0
          %324 = vmatpush1.msra.mxu0 0.0
          %325 = vmatprep.subr.mxu0 0.0
          %326 = vmatpush1.msra.mxu0 0.0
          %327 = vmatprep.subr.mxu0 0.0
          %328 = vmatpush1.msra.mxu0 0.0
          %329 = vmatprep.subr.mxu0 0.0
          %330 = vmatpush1.msra.mxu0 0.0
          %331 = vmatprep.subr.mxu0 0.0
          %332 = vmatpush1.msra.mxu0 0.0
          %333 = vmatprep.subr.mxu0 0.0
          %334 = vmatpush1.msra.mxu0 0.0
          %335 = vmatprep.subr.mxu0 0.0
          %336 = vmatpush1.msra.mxu0 0.0
          %337 = vmatprep.subr.mxu0 0.0
          %338 = vmatpush1.msra.mxu0 0.0
          %339 = vmatprep.subr.mxu0 0.0
          %340 = vmatpush1.msra.mxu0 0.0
          %341 = vmatprep.subr.mxu0 0.0
          %342 = vmatpush1.msra.mxu0 0.0
          %343 = vmatprep.subr.mxu0 0.0
          %344 = vmatpush1.msra.mxu0 0.0
          %345 = vmatprep.subr.mxu0 0.0
          %346 = vmatpush1.msra.mxu0 0.0
          %347 = vmatprep.subr.mxu0 0.0
          %348 = vmatpush1.msra.mxu0 0.0
          %349 = vmatprep.subr.mxu0 0.0
          %350 = vmatpush1.msra.mxu0 0.0
          %351 = vmatprep.subr.mxu0 0.0
          %352 = vmatpush1.msra.mxu0 0.0
          %353 = vmatprep.subr.mxu0 0.0
          %354 = vmatpush1.msra.mxu0 0.0
          %355 = vmatprep.mubr.f32.mxu0 0.0
          %356 = vmatmul.mubr.f32.gmra.mrb[0].mxu0 %v285
          %v357 = vpop.f32.mrb[0].mxu0
          %v358 = vadd.f32 0.0, %v357
          %v359 = vpop.f32.mrb[0].mxu0
          %360 = vdwg.mxu0
          %361 = vst [vmem:[#allocation2] sm:$0xff] %v358
        $region40: #{multiple_experts_linear.1} parent=35 // pred_fallthru
          _
        %v362 = vlaneseq
        %v363 = vand.u32 %v362, 127
        %v364 = vstv %s23
        %vm365 = vcmp.eq.s32.totalorder %v363, %v364
        %v366 = vsel %vm365, %v277, 0.0
        %vm367 = vcmask 31744
        %v368 = vsel %vm367, %v366, 0.0
        %369 = vadd.xlane.f32.xlu0 %v368
        %v370 = vpop.xlane.xlu0 %369
        %v371 = vld [vmem:[%s262] sm:$0xff]
        %v372 = vmul.f32 %v370, %v371
        %v373 = vld [vmem:[#allocation2] sm:$0xff]
        %v374 = vld [vmem:[%s271] sm:$0xff]
        %v375 = vld [vmem:[%s271 + $0x8] sm:$0xff]
        %v376 = vld [vmem:[%s271 + $0x10] sm:$0xff]
        %v377 = vld [vmem:[%s271 + $0x18] sm:$0xff]
        %v378 = vld [vmem:[%s271 + $0x20] sm:$0xff]
        %v379 = vld [vmem:[%s271 + $0x28] sm:$0xff]
        %v380 = vld [vmem:[%s271 + $0x30] sm:$0xff]
        %v381 = vld [vmem:[%s271 + $0x38] sm:$0xff]
        %v382 = vld [vmem:[%s271 + $0x40] sm:$0xff]
        %v383 = vld [vmem:[%s271 + $0x48] sm:$0xff]
        %v384 = vld [vmem:[%s271 + $0x50] sm:$0xff]
        %v385 = vld [vmem:[%s271 + $0x58] sm:$0xff]
        %v386 = vld [vmem:[%s271 + $0x60] sm:$0xff]
        %v387 = vld [vmem:[%s271 + $0x68] sm:$0xff]
        %v388 = vld [vmem:[%s271 + $0x70] sm:$0xff]
        %v389 = vld [vmem:[%s271 + $0x78] sm:$0xff]
        %vm390 = vcmask 261120
        %v392 = vsel %vm390, %v372, 0
        %v395 = vsel %vm390, %v374, 0
        %v398 = vsel %vm390, %v375, 0
        %v401 = vsel %vm390, %v376, 0
        %v404 = vsel %vm390, %v377, 0
        %v407 = vsel %vm390, %v378, 0
        %v410 = vsel %vm390, %v379, 0
        %v413 = vsel %vm390, %v380, 0
        %v416 = vsel %vm390, %v381, 0
        %v419 = vsel %vm390, %v382, 0
        %v422 = vsel %vm390, %v383, 0
        %v425 = vsel %vm390, %v384, 0
        %v428 = vsel %vm390, %v385, 0
        %v431 = vsel %vm390, %v386, 0
        %v434 = vsel %vm390, %v387, 0
        %v437 = vsel %vm390, %v388, 0
        %v440 = vsel %vm390, %v389, 0
        %442 = vmatprep.subr.mxu0 0.0
        %443 = vmatpush1.xpose.msra.mxu0 %v395
        %444 = vmatprep.subr.mxu0 0.0
        %445 = vmatpush1.xpose.msra.mxu0 %v398
        %446 = vmatprep.subr.mxu0 0.0
        %447 = vmatpush1.xpose.msra.mxu0 %v401
        %448 = vmatprep.subr.mxu0 0.0
        %449 = vmatpush1.xpose.msra.mxu0 %v404
        %450 = vmatprep.subr.mxu0 0.0
        %451 = vmatpush1.xpose.msra.mxu0 %v407
        %452 = vmatprep.subr.mxu0 0.0
        %453 = vmatpush1.xpose.msra.mxu0 %v410
        %454 = vmatprep.subr.mxu0 0.0
        %455 = vmatpush1.xpose.msra.mxu0 %v413
        %456 = vmatprep.subr.mxu0 0.0
        %457 = vmatpush1.xpose.msra.mxu0 %v416
        %458 = vmatprep.subr.mxu0 0.0
        %459 = vmatpush1.xpose.msra.mxu0 %v419
        %460 = vmatprep.subr.mxu0 0.0
        %461 = vmatpush1.xpose.msra.mxu0 %v422
        %462 = vmatprep.subr.mxu0 0.0
        %463 = vmatpush1.xpose.msra.mxu0 %v425
        %464 = vmatprep.subr.mxu0 0.0
        %465 = vmatpush1.xpose.msra.mxu0 %v428
        %466 = vmatprep.subr.mxu0 0.0
        %467 = vmatpush1.xpose.msra.mxu0 %v431
        %468 = vmatprep.subr.mxu0 0.0
        %469 = vmatpush1.xpose.msra.mxu0 %v434
        %470 = vmatprep.subr.mxu0 0.0
        %471 = vmatpush1.xpose.msra.mxu0 %v437
        %472 = vmatprep.subr.mxu0 0.0
        %473 = vmatpush1.xpose.msra.mxu0 %v440
        %474 = vmatprep.subr.mxu0 0.0
        %475 = vmatpush1.xpose.msra.mxu0 0.0
        %476 = vmatprep.subr.mxu0 0.0
        %477 = vmatpush1.xpose.msra.mxu0 0.0
        %478 = vmatprep.subr.mxu0 0.0
        %479 = vmatpush1.xpose.msra.mxu0 0.0
        %480 = vmatprep.subr.mxu0 0.0
        %481 = vmatpush1.xpose.msra.mxu0 0.0
        %482 = vmatprep.subr.mxu0 0.0
        %483 = vmatpush1.xpose.msra.mxu0 0.0
        %484 = vmatprep.subr.mxu0 0.0
        %485 = vmatpush1.xpose.msra.mxu0 0.0
        %486 = vmatprep.subr.mxu0 0.0
        %487 = vmatpush1.xpose.msra.mxu0 0.0
        %488 = vmatprep.subr.mxu0 0.0
        %489 = vmatpush1.xpose.msra.mxu0 0.0
        %490 = vmatprep.subr.mxu0 0.0
        %491 = vmatpush1.xpose.msra.mxu0 0.0
        %492 = vmatprep.subr.mxu0 0.0
        %493 = vmatpush1.xpose.msra.mxu0 0.0
        %494 = vmatprep.subr.mxu0 0.0
        %495 = vmatpush1.xpose.msra.mxu0 0.0
        %496 = vmatprep.subr.mxu0 0.0
        %497 = vmatpush1.xpose.msra.mxu0 0.0
        %498 = vmatprep.subr.mxu0 0.0
        %499 = vmatpush1.xpose.msra.mxu0 0.0
        %500 = vmatprep.subr.mxu0 0.0
        %501 = vmatpush1.xpose.msra.mxu0 0.0
        %502 = vmatprep.subr.mxu0 0.0
        %503 = vmatpush1.xpose.msra.mxu0 0.0
        %504 = vmatprep.subr.mxu0 0.0
        %505 = vmatpush1.xpose.msra.mxu0 0.0
        %506 = vmatprep.mubr.f32.mxu0 0.0
        %507 = vmatmul.mubr.f32.gmra.mrb[0].mxu0 %v392
        %v508 = vpop.f32.mrb[0].mxu0
        %v509 = vadd.f32 0.0, %v508
        %v510 = vpop.f32.mrb[0].mxu0
        %511 = vdwg.mxu0
        %v512 = vadd.f32 %v373, %v509
        %513 = vst [vmem:[#allocation2] sm:$0xff] %v512
        // Predicated region
        $region41: #{multiple_experts_linear.1} parent=35 // pred_check
          %p514 = pneg %p161
        $region42: #{multiple_experts_linear.1} parent=35 // pred_check_branch
          %516 = sbr.rel (%p514) target = $region44
        $region43: #{multiple_experts_linear.1} parent=35 // pred_region
          %s518 = ssub.s32 128, 128
          %519 = vsyncadd [#allocation3], %s518
          %s520 = sadd.s32 %s22, %s21
          %s521 = smul.addr %s520, 128
          %s522 = scalar_lea.hbm %s4, %s521
          %s524 = sshll.u32 [#allocation2], 4
          %s525 = int_to_ptr.vmem [resolvable:$true] %s524
          %527 = dma.vmem_to_hbm [thread:$0]  %s525, 128, %s522, [#allocation3]
        $region44: #{multiple_experts_linear.1} parent=35 // pred_fallthru
          _
        // Predicated region
        $region45: #{multiple_experts_linear.1} parent=35 // pred_check
          %p528 = pneg %p161
        $region46: #{multiple_experts_linear.1} parent=35 // pred_check_branch
          %530 = sbr.rel (%p528) target = $region48
        $region47: #{multiple_experts_linear.1} parent=35 // pred_region
          %531 = dma.done [#allocation3], 128
        $region48: #{multiple_experts_linear.1} parent=35 // pred_fallthru
          _
      $region36: #{multiple_experts_linear.1} parent=5 // pred_fallthru
        _
      %p532 = scmp.le.s32.totalorder 2, %s11
      // Predicated region
      $region49: #{multiple_experts_linear.1} parent=5 // pred_check
        %p533 = pneg %p532
      $region50: #{multiple_experts_linear.1} parent=5 // pred_check_branch
        %535 = sbr.rel (%p533) target = $region52
      $region51: #{multiple_experts_linear.1} parent=5 // pred_region
        %s536 = ssub.s32 %s11, 2
      $region52: #{multiple_experts_linear.1} parent=5 // pred_fallthru
        _
    $region6: #{multiple_experts_linear.1} parent=1 // loop_footer
      %s15 = sadd.s32 1, %s11
    $region7: #{multiple_experts_linear.1} parent=1 // loop_footer_branch
      %10 = sbr.rel target = $region3
    $region8: #{multiple_experts_linear.1} parent=1 // loop_exit
      _
    %537 = vsyncpa [#allocation3], 1
    %s538 = scalar_lea.sflag [#allocation3], 1
    %539 = vsyncpa %s538, 1

</llo_original>
